<compile_context>
chip_gen: v6e
topology: v6e:2x2x1
jax: 0.10.0
libtpu: 0.0.40
codegen_flags: <defaults>
</compile_context>

<pallas_src>
import math
import functools

import jax
import jax.numpy as jnp
from jax.experimental import pallas as pl
from jax.experimental.pallas import tpu as pltpu


_LANE = 128          # lane width: pad d_model to this for lane-dense stores
_SUBLANE = 16        # row granularity (covers f32 (8) and packed bf16 (16))
_MAX_ROW_TILE = 512  # rows per grid step: 512*1024*4B = 2 MiB out block (x2 bufs)


def _round_up(x, m):
    return (x + m - 1) // m * m


# ---------------------------------------------------------------------------
# Kernels
# ---------------------------------------------------------------------------
def _token_embed_kernel(x_ref, wt_ref, o_ref):
    # x_ref : (TM, C) f32, wt_ref : (C, Dp) bf16, o_ref : (TM, Dp) f32
    y = jnp.dot(x_ref[...].astype(jnp.bfloat16), wt_ref[...],
                preferred_element_type=jnp.float32)
    o_ref[...] = y.astype(o_ref.dtype)


def _token_embed_pe_kernel(x_ref, wt_ref, pe_ref, o_ref):
    # PE add kept in f32 on the VPU (v5e has no bf16 VALU path).
    y = jnp.dot(x_ref[...].astype(jnp.bfloat16), wt_ref[...],
                preferred_element_type=jnp.float32)
    o_ref[...] = (y + pe_ref[...]).astype(o_ref.dtype)


# ---------------------------------------------------------------------------
# pallas_call wrappers
# ---------------------------------------------------------------------------
def _embed_flat(x2, wt_pad, tm):
    """pos='none': (Mp, C) @ (C, Dp) with M = B*L flattened and tiled."""
    Mp, C = x2.shape
    Dp = wt_pad.shape[1]
    n_m = Mp // tm
    cost = pl.CostEstimate(
        flops=2 * Mp * C * Dp,
        transcendentals=0,
        bytes_accessed=x2.size * 4 + wt_pad.size * 2 + Mp * Dp * 4,
    )
    return pl.pallas_call(
        _token_embed_kernel,
        out_shape=jax.ShapeDtypeStruct((Mp, Dp), jnp.float32),
        grid_spec=pltpu.PrefetchScalarGridSpec(
            num_scalar_prefetch=0,
            grid=(n_m,),
            in_specs=[
                pl.BlockSpec((tm, C), lambda i: (i, 0)),
                pl.BlockSpec((C, Dp), lambda i: (0, 0)),  # resident: fetched once
            ],
            out_specs=pl.BlockSpec((tm, Dp), lambda i: (i, 0)),
        ),
        compiler_params=pltpu.CompilerParams(
            dimension_semantics=("parallel",)),
        cost_estimate=cost,
    )(x2, wt_pad)


def _embed_pe(x3, wt_pad, pe_pad, tl):
    """pos='fixed'/'learnable': grid (L_tiles, B); batch is the inner axis so
    the PE tile's block index is unchanged across consecutive steps and its
    re-fetch is elided (PE HBM traffic ~= L*D total, not B*L*D)."""
    B, Lp, C = x3.shape
    Dp = wt_pad.shape[1]
    n_lt = Lp // tl
    cost = pl.CostEstimate(
        flops=2 * B * Lp * C * Dp,
        transcendentals=0,
        bytes_accessed=(x3.size * 4 + wt_pad.size * 2 + pe_pad.size * 4
                        + B * Lp * Dp * 4),
    )
    return pl.pallas_call(
        _token_embed_pe_kernel,
        out_shape=jax.ShapeDtypeStruct((B, Lp, Dp), jnp.float32),
        grid_spec=pltpu.PrefetchScalarGridSpec(
            num_scalar_prefetch=0,
            grid=(n_lt, B),
            in_specs=[
                pl.BlockSpec((None, tl, C), lambda lt, b: (b, lt, 0)),
                pl.BlockSpec((C, Dp), lambda lt, b: (0, 0)),
                pl.BlockSpec((tl, Dp), lambda lt, b: (lt, 0)),
            ],
            out_specs=pl.BlockSpec((None, tl, Dp), lambda lt, b: (b, lt, 0)),
        ),
        compiler_params=pltpu.CompilerParams(
            dimension_semantics=("parallel", "parallel")),
        cost_estimate=cost,
    )(x3, wt_pad, pe_pad)


# ---------------------------------------------------------------------------
# Parameter / buffer construction (done once, at "model init")
# ---------------------------------------------------------------------------
def prepare_token_weight(weight):
    """weight: (d_model, last_dim), PyTorch nn.Linear(bias=False) layout.
    Transpose, pad the lane dim to a multiple of 128, cast to bf16 -- once."""
    d_model, _ = weight.shape
    d_pad = _round_up(d_model, _LANE)
    wt = jnp.transpose(weight)                               # (C, D)
    wt = jnp.pad(wt, ((0, 0), (0, d_pad - d_model)))
    return wt.astype(jnp.bfloat16)                           # (C, Dp)


def make_fixed_positional_embedding(d_model, max_len=5000):
    """Reproduces PositionalEmbedding buffer (sin/cos interleaved), f32."""
    position = jnp.arange(0, max_len, dtype=jnp.float32)[:, None]
    div_term = jnp.exp(jnp.arange(0, d_model, 2, dtype=jnp.float32)
                       * -(math.log(10000.0) / d_model))
    angles = position * div_term
    pe = jnp.zeros((max_len, d_model), dtype=jnp.float32)
    pe = pe.at[:, 0::2].set(jnp.sin(angles))
    pe = pe.at[:, 1::2].set(jnp.cos(angles)[:, : d_model // 2])
    return pe


# ---------------------------------------------------------------------------
# Forward (DataEmbedding.forward; dropout = eval-mode identity)
# ---------------------------------------------------------------------------
@functools.partial(jax.jit, static_argnames=("d_model",))
def data_embedding_forward(x, wt_pad, d_model, pe_table=None):
    B, L, C = x.shape
    d_pad = wt_pad.shape[1]

    if pe_table is None:
        # pos_embed_type='none': dedicated kernel, no zeros PE slab, flat B*L.
        M = B * L
        tm = min(_MAX_ROW_TILE, _round_up(M, _SUBLANE))
        Mp = _round_up(M, tm)
        x2 = jnp.pad(x.reshape(M, C), ((0, Mp - M), (0, 0)))
        out = _embed_flat(x2, wt_pad, tm)
        return out[:M, :d_model].reshape(B, L, d_model)

    # pos_embed_type='fixed' or 'learnable': additive PE table (>= L, d_model)
    if pe_table.shape[0] < L:
        raise ValueError("pe_table is shorter than the sequence length")
    tl = min(_MAX_ROW_TILE, _round_up(L, _SUBLANE))
    Lp = _round_up(L, tl)
    x3 = jnp.pad(x, ((0, 0), (0, Lp - L), (0, 0)))
    pe_pad = jnp.pad(pe_table[:L, :], ((0, Lp - L), (0, d_pad - d_model)))
    out = _embed_pe(x3, wt_pad, pe_pad, tl)
    return out[:, :L, :d_model]


# ---------------------------------------------------------------------------
# Demo / self-check
# ---------------------------------------------------------------------------
if __name__ == "__main__":
    B, L, C, D = 2, 8, 4, 32  # batch, seq_len, last_dim, d_model

    key = jax.random.PRNGKey(0)
    kx, kw = jax.random.split(key)
    x = jax.random.normal(kx, (B, L, C), dtype=jnp.float32)
    # nn.Linear(last_dim, d_model, bias=False) weight: (d_model, last_dim)
    weight = jax.random.normal(kw, (D, C), dtype=jnp.float32) * (1.0 / math.sqrt(C))

    wt_pad = prepare_token_weight(weight)            # hoisted: once at init
    pe_table = make_fixed_positional_embedding(D)

    # Config 1: default DataEmbedding (pos='none', token='linear')
    out_none = data_embedding_forward(x, wt_pad, d_model=D)
    # Config 2: fixed sinusoidal positional embedding
    out_fixed = data_embedding_forward(x, wt_pad, d_model=D, pe_table=pe_table)
    jax.block_until_ready((out_none, out_fixed))

    # Reference with matched operand rounding (bf16 operands, f32 accumulate).
    xb = x.astype(jnp.bfloat16).astype(jnp.float32)
    wb = weight.T.astype(jnp.bfloat16).astype(jnp.float32)
    ref_none = jnp.einsum("blc,cd->bld", xb, wb)
    ref_fixed = ref_none + pe_table[None, :L, :]
    assert out_none.shape == (B, L, D) and out_fixed.shape == (B, L, D)
    assert jnp.allclose(out_none, ref_none, atol=1e-4, rtol=1e-4)
    assert jnp.allclose(out_fixed, ref_fixed, atol=1e-4, rtol=1e-4)

    # Loose check against full-f32 module math (only bf16 operand rounding differs).
    ref_f32 = jnp.einsum("blc,dc->bld", x, weight)
    assert jnp.allclose(out_none, ref_f32, atol=1e-1, rtol=1e-1)
    assert jnp.allclose(out_fixed, ref_f32 + pe_table[None, :L, :],
                        atol=1e-1, rtol=1e-1)

    print("KERNEL_OK")
</pallas_src>

<mosaic_0001>
module attributes {stable_mosaic.version = 11 : i64} {
  func.func @_token_embed_kernel(%arg0: i32, %arg1: memref<16x4xf32, #tpu.memory_space<vmem>>, %arg2: memref<4x128xbf16, #tpu.memory_space<vmem>>, %arg3: memref<16x128xf32, #tpu.memory_space<vmem>>) attributes {dimension_semantics = [#tpu.dimension_semantics<parallel>], iteration_bounds = array<i64: 1>, scalar_prefetch = 0 : i64, scratch_operands = 0 : i64, tpu.core_type = #tpu.core_type<tc>, window_params = [{transform_indices = @transform_0, window_bounds = array<i64: 16, 4>}, {pipeline_mode = #tpu.pipeline_mode<synchronous>, transform_indices = @transform_1, window_bounds = array<i64: 4, 128>}, {transform_indices = @transform_2, window_bounds = array<i64: 16, 128>}]} {
    %c0 = arith.constant 0 : index
    %c0_0 = arith.constant 0 : index
    %0 = vector.load %arg1[%c0, %c0_0] : memref<16x4xf32, #tpu.memory_space<vmem>>, vector<16x4xf32>
    %1 = arith.truncf %0 : vector<16x4xf32> to vector<16x4xbf16>
    %c0_1 = arith.constant 0 : index
    %c0_2 = arith.constant 0 : index
    %2 = vector.load %arg2[%c0_1, %c0_2] : memref<4x128xbf16, #tpu.memory_space<vmem>>, vector<4x128xbf16>
    %cst = arith.constant dense<0.000000e+00> : vector<16x128xf32>
    %3 = tpu.matmul %1, %2, %cst {dimension_numbers = #tpu.dot_dimension_numbers<[1], [0], [0], [1], [0, 0, 1, 1], [], []>} : vector<16x4xbf16>, vector<4x128xbf16>, vector<16x128xf32> -> vector<16x128xf32>
    %c0_3 = arith.constant 0 : index
    %c0_4 = arith.constant 0 : index
    %4 = vector.load %arg3[%c0_3, %c0_4] : memref<16x128xf32, #tpu.memory_space<vmem>>, vector<16x128xf32>
    tpu.vector_store %arg3[%c0_3, %c0_4], %3 {strides = array<i32>} : memref<16x128xf32, #tpu.memory_space<vmem>>, vector<16x128xf32>,
    return
  }
  func.func @transform_0(%arg0: i32) -> (i32, i32) {
    %c0_i32 = arith.constant 0 : i32
    %c0_i32_0 = arith.constant 0 : i32
    return %arg0, %c0_i32 : i32, i32
  }
  func.func @transform_1(%arg0: i32) -> (i32, i32) {
    %c0_i32 = arith.constant 0 : i32
    %c0_i32_0 = arith.constant 0 : i32
    %c0_i32_1 = arith.constant 0 : i32
    return %c0_i32, %c0_i32_0 : i32, i32
  }
  func.func @transform_2(%arg0: i32) -> (i32, i32) {
    %c0_i32 = arith.constant 0 : i32
    %c0_i32_0 = arith.constant 0 : i32
    return %arg0, %c0_i32 : i32, i32
  }
}

</mosaic_0001>

<llo_original>
// kernel: data_embedding_forward.1
$region0: #{data_embedding_forward.1}
  #allocation0 [shape = 'u32[]', space=smem, size = 0x4, offset = 0x4, fixed_abs, tag = 'smem constant byte address 0x4 - core index']
  #allocation1 [shape = 'u32[144,128]{1,0:T(1,128)}', space=vmem, size = 0x12000, scoped, tag = 'internal scratch']
  %s0 = inlined_call_operand.vmem [shape: f32[16,4], index: 0, kind: input, shape index: {}]
  %s1 = inlined_call_operand.vmem [shape: bf16[4,128], index: 1, kind: input, shape index: {}]
  %s2 = inlined_call_operand.vmem [shape: f32[16,128], index: 2, kind: output, shape index: {}]
  %s3 = sld [smem:[#allocation0]]
  $region18: #{data_embedding_forward.1} parent=0
    _
  %s5 = ssub.s32 1, %s3
  %s6 = scalar_select 0, %s5, %s3
  // Predicated region
  $region2: #{data_embedding_forward.1} parent=0 // pred_check
    _
  $region3: #{data_embedding_forward.1} parent=0 // pred_check_branch
    %8 = sbr.rel (0) target = $region5
  $region4: #{data_embedding_forward.1} parent=0 // pred_region
    _
  $region5: #{data_embedding_forward.1} parent=0 // pred_fallthru
    _
  // Predicated region
  $region6: #{data_embedding_forward.1} parent=0 // pred_check
    _
  $region7: #{data_embedding_forward.1} parent=0 // pred_check_branch
    %10 = sbr.rel (0) target = $region9
  $region8: #{data_embedding_forward.1} parent=0 // pred_region
    _
  $region9: #{data_embedding_forward.1} parent=0 // pred_fallthru
    _
  %v12 = vld [vmem:[%s0] sm:$0xff]
  %v13 = vld [vmem:[%s0 + $0x8] sm:$0xff]
  %v14 = vpack.c.bf16 %v13, %v12
  %v15 = vld [vmem:[%s1] sm:$0x3]
  %vm16 = vcmask 31744
  %v18 = vsel %vm16, %v14, 0
  %vm20 = vcmask 1041408
  %v22 = vsel %vm20, %v15, 0
  %24 = vmatprep.subr.bf16.mxu0 0
  %25 = vmatpush1.bf16.msra.mxu0 0
  %26 = vmatprep.subr.bf16.mxu0 0
  %27 = vmatpush1.bf16.msra.mxu0 0
  %28 = vmatprep.subr.bf16.mxu0 0
  %29 = vmatpush1.bf16.msra.mxu0 0
  %30 = vmatprep.subr.bf16.mxu0 0
  %31 = vmatpush1.bf16.msra.mxu0 0
  %32 = vmatprep.subr.bf16.mxu0 0
  %33 = vmatpush1.bf16.msra.mxu0 0
  %34 = vmatprep.subr.bf16.mxu0 0
  %35 = vmatpush1.bf16.msra.mxu0 0
  %36 = vmatprep.subr.bf16.mxu0 0
  %37 = vmatpush1.bf16.msra.mxu0 0
  %38 = vmatprep.subr.bf16.mxu0 0
  %39 = vmatpush1.bf16.msra.mxu0 %v22
  %40 = vmatprep.subr.bf16.mxu0 0
  %41 = vmatpush2.bf16.msra.mxu0 0
  %42 = vmatprep.subr.bf16.mxu0 0
  %43 = vmatpush2.bf16.msra.mxu0 0
  %44 = vmatprep.subr.bf16.mxu0 0
  %45 = vmatpush2.bf16.msra.mxu0 0
  %46 = vmatprep.subr.bf16.mxu0 0
  %47 = vmatpush2.bf16.msra.mxu0 0
  %48 = vmatprep.subr.bf16.mxu0 0
  %49 = vmatpush2.bf16.msra.mxu0 0
  %50 = vmatprep.subr.bf16.mxu0 0
  %51 = vmatpush2.bf16.msra.mxu0 0
  %52 = vmatprep.subr.bf16.mxu0 0
  %53 = vmatpush2.bf16.msra.mxu0 0
  %54 = vmatprep.subr.bf16.mxu0 0
  %55 = vmatpush2.bf16.msra.mxu0 0
  %56 = vmatprep.mubr.bf16.mxu0 0
  %57 = vmatmul.mubr.bf16.gmra.mxu0 %v18
  %v58 = vpop.f32.mrf.mxu0
  %v59 = vadd.f32 0.0, %v58
  %v60 = vpop.f32.mrf.mxu0
  %v61 = vpop.f32.mrf.mxu0
  %v62 = vadd.f32 0.0, %v61
  %v63 = vpop.f32.mrf.mxu0
  %64 = vdwg.mxu0
  %65 = vst [vmem:[%s2] sm:$0xff] %v59
  %66 = vst [vmem:[%s2 + $0x8] sm:$0xff] %v62
  // Predicated region
  $region10: #{data_embedding_forward.1} parent=0 // pred_check
    _
  $region11: #{data_embedding_forward.1} parent=0 // pred_check_branch
    %68 = sbr.rel (0) target = $region13
  $region12: #{data_embedding_forward.1} parent=0 // pred_region
    _
  $region13: #{data_embedding_forward.1} parent=0 // pred_fallthru
    _
  // Predicated region
  $region14: #{data_embedding_forward.1} parent=0 // pred_check
    _
  $region15: #{data_embedding_forward.1} parent=0 // pred_check_branch
    %70 = sbr.rel (0) target = $region17
  $region16: #{data_embedding_forward.1} parent=0 // pred_region
    _
  $region17: #{data_embedding_forward.1} parent=0 // pred_fallthru
    _

</llo_original>
